<compile_context>
chip_gen: v6e
topology: v6e:2x2x1
jax: 0.10.0
libtpu: 0.0.40
codegen_flags: <defaults>
</compile_context>

<pallas_src>
import functools
import math

import jax
import jax.numpy as jnp
from jax import lax
from jax.experimental import pallas as pl
from jax.experimental.pallas import tpu as pltpu

# ------------------------- small synthetic model dims -------------------------
B = 2          # batch
N_MELS = 8     # mel channels (whisper: 80)
T = 16         # mel frames  (whisper: 3000); n_audio_ctx = T // 2
N_STATE = 32   # model width (whisper: 384..1280)
N_HEAD = 4
N_LAYER = 2
N_CTX_MAX = 12  # registered positional_embedding rows (> T//2, exercises slicing)
T2 = T // 2
HEAD_DIM = N_STATE // N_HEAD
LN_EPS = 1e-5

MM_DTYPE = jnp.bfloat16   # stacked-weight / matmul-operand dtype (f32 accumulate)
Q_TILE_TARGET = 256       # query-row tile target (256 for v6e/v7x MXU; 128 on v5e)


# TODO(synk): PyTorch F.gelu defaults to the exact erf formulation; the tanh
# approximation is used for guaranteed Mosaic transcendental support.
def _gelu(x):
    return 0.5 * x * (1.0 + jnp.tanh(0.7978845608028654 * (x + 0.044715 * x * x * x)))


def _layernorm(z, w, b):
    m = jnp.mean(z, axis=-1, keepdims=True)
    c = z - m
    v = jnp.mean(c * c, axis=-1, keepdims=True)
    return c * lax.rsqrt(v + LN_EPS) * w + b


def _shift_down(a):
    """out[t] = a[t-1], zero first row (lower time halo).  XLU roll."""
    r = lax.broadcasted_iota(jnp.int32, a.shape, 0)
    return jnp.where(r == 0, 0.0, pltpu.roll(a, 1, 0))


def _shift_up(a):
    """out[t] = a[t+1], zero last row (upper time halo).  XLU roll."""
    n = a.shape[0]
    r = lax.broadcasted_iota(jnp.int32, a.shape, 0)
    return jnp.where(r == n - 1, 0.0, pltpu.roll(a, n - 1, 0))


# ------------------------- stage 1: conv stem kernel --------------------------
def stem_kernel(x_ref, w1c_ref, b1_ref, w2c_ref, b2_ref, pos_ref, h0_ref):
    """conv1 -> GELU -> conv2(s=2) -> GELU -> + pos_embed for one batch item."""
    f32 = jnp.float32
    mm_dt = w1c_ref.dtype
    x_e = x_ref[0].astype(f32)        # x[2t]   (T2, n_mels)
    x_o = x_ref[1].astype(f32)        # x[2t+1] (T2, n_mels)
    w1 = w1c_ref[...]
    b1 = b1_ref[...]
    # conv1 (k=3,s=1,p=1): three taps fused into one (T2, 3*Cin)@(3*Cin, Cout)
    # MXU contraction per time-parity; halos via rolls, not a padded HBM copy.
    y1e_in = jnp.concatenate([_shift_down(x_o), x_e, x_o], axis=-1)
    y1o_in = jnp.concatenate([x_e, x_o, _shift_up(x_e)], axis=-1)
    y1e = _gelu(jnp.dot(y1e_in.astype(mm_dt), w1, preferred_element_type=f32) + b1)
    y1o = _gelu(jnp.dot(y1o_in.astype(mm_dt), w1, preferred_element_type=f32) + b1)
    # conv2 (k=3,s=2,p=1): y2[t] = w2[0]*y1[2t-1] + w2[1]*y1[2t] + w2[2]*y1[2t+1]
    y2_in = jnp.concatenate([_shift_down(y1o), y1e, y1o], axis=-1)
    y2 = _gelu(jnp.dot(y2_in.astype(mm_dt), w2c_ref[...],
                       preferred_element_type=f32) + b2_ref[...])
    h0_ref[...] = y2 + pos_ref[...]


# ------------------------- stage 2: transformer sweep -------------------------
def layer_kernel(h0_ref, vec_ref, wq_ref, wk_ref, wv_ref, wo3_ref,
                 wm1_ref, wm2_ref, bm1_ref, lnpw_ref, lnpb_ref,
                 out_ref, qkv_ref, xm_ref, *, n_head, q_tile, t_ctx):
    f32 = jnp.float32
    l = pl.program_id(1)
    c = pl.program_id(2)
    n_layer = pl.num_programs(1)
    n_chunks = pl.num_programs(2)
    rows, n_state = out_ref.shape
    hd = n_state // n_head
    mm_dt = wq_ref.dtype

    # Seed the resident hidden state (out_ref stays in VMEM across the whole
    # layer / ffn-chunk sweep for this row block) from the conv-stem output.
    @pl.when((l == 0) & (c == 0))
    def _seed():
        out_ref[...] = h0_ref[...]

    # ---- pre-LN MHA: runs once per layer (at ffn-chunk 0) --------------------
    @pl.when(c == 0)
    def _attention():
        vecs = vec_ref[0]                      # (8, n_state) packed per-layer vectors
        aln_w, aln_b = vecs[0:1], vecs[1:2]
        bq, bv, bo = vecs[2:3], vecs[3:4], vecs[4:5]
        mln_w, mln_b = vecs[5:6], vecs[6:7]

        h = out_ref[...]                                     # (rows, n_state) f32
        xab = _layernorm(h, aln_w, aln_b).astype(mm_dt)

        # Full-width Q/K/V projections (1/sqrt(hd) pre-folded into wq/bq).
        # Per-head tiles are staged head-major in VMEM so the head fori_loop
        # reads whole (rows, hd) tiles -- no dynamic lane slicing, no concat.
        def _stage(slot, mat):
            for hh in range(n_head):                         # fill-only static loop
                qkv_ref[slot, hh] = mat[:, hh * hd:(hh + 1) * hd].astype(mm_dt)

        _stage(0, jnp.dot(xab, wq_ref[0], preferred_element_type=f32) + bq)
        _stage(1, jnp.dot(xab, wk_ref[0], preferred_element_type=f32))   # no k bias
        _stage(2, jnp.dot(xab, wv_ref[0], preferred_element_type=f32) + bv)

        n_tiles = rows // q_tile

        def tile_body(ti, carry):
            row0 = pl.multiple_of(ti * q_tile, 8)
            krow0 = (row0 // t_ctx) * t_ctx       # keys only from this batch item

            def head_body(hh, acc):
                qh = qkv_ref[0, hh, pl.ds(row0, q_tile), :]
                kh = qkv_ref[1, hh, pl.ds(krow0, t_ctx), :]
                vh = qkv_ref[2, hh, pl.ds(krow0, t_ctx), :]
                s = lax.dot_general(qh, kh, (((1,), (1,)), ((), ())),
                                    preferred_element_type=f32)   # (q_tile, t_ctx)
                s = s - jnp.max(s, axis=-1, keepdims=True)
                e = jnp.exp(s)
                p = e * pl.reciprocal(jnp.sum(e, axis=-1, keepdims=True), approx=True)
                oh = jnp.dot(p.astype(mm_dt), vh, preferred_element_type=f32)
                # this head's slice of the output projection, accumulated in f32
                return acc + jnp.dot(oh.astype(mm_dt), wo3_ref[0, hh],
                                     preferred_element_type=f32)

            acc = lax.fori_loop(0, n_head, head_body,
                                jnp.zeros((q_tile, n_state), f32))
            res = out_ref[pl.ds(row0, q_tile), :]
            out_ref[pl.ds(row0, q_tile), :] = res + acc + bo
            return carry

        lax.fori_loop(0, n_tiles, tile_body, 0)

        # Pre-LN MLP input, staged once (bf16) so every ffn weight chunk reuses it.
        xm_ref[...] = _layernorm(out_ref[...], mln_w, mln_b).astype(mm_dt)

    # ---- MLP: one column chunk of wm1/wm2 per grid step along axis 2 ---------
    bm2 = vec_ref[0, 7:8]
    xm = xm_ref[...]
    up = _gelu(jnp.dot(xm, wm1_ref[0, 0], preferred_element_type=f32) + bm1_ref[0, 0])
    delta = jnp.dot(up.astype(mm_dt), wm2_ref[0, 0], preferred_element_type=f32)
    gate = (c == 0).astype(f32)                   # add bm2 exactly once per layer
    out_ref[...] = out_ref[...] + delta + bm2 * gate

    # ---- final LayerNorm in place on the resident hidden state ---------------
    @pl.when((l == n_layer - 1) & (c == n_chunks - 1))
    def _final():
        out_ref[...] = _layernorm(out_ref[...], lnpw_ref[...], lnpb_ref[...])


# --------------------------------- wrapper ------------------------------------
def _vmem_limit_bytes():
    """Per-generation VMEM budget (~85% of physical: ~108MiB v5e/v6e, ~54MiB v7x)."""
    try:
        cap = getattr(pltpu.get_tpu_info(), "vmem_capacity_bytes", None)
        if cap:
            return int(cap * 0.85)
    except Exception:
        pass
    return 48 * 1024 * 1024


def _pick_q_tile(t_ctx, target=Q_TILE_TARGET):
    """Largest multiple-of-8 divisor of t_ctx that is <= target."""
    for cand in range(min(target, t_ctx), 7, -1):
        if t_ctx % cand == 0 and cand % 8 == 0:
            return cand
    # TODO(synk): at real Whisper sizes (T2=1500) pad the context to a multiple
    # of the query tile instead of falling back to a single tile.
    return t_ctx


def audio_encoder_trt_forward(x, params, *, row_splits=1, ffn_chunks=1):
    """AudioEncoderTRT.forward for x: (B, n_mels, T) f32 mel spectrogram (NCL).

    row_splits: number of parallel row blocks.  1 folds the whole batch into one
      block so layer weights stream from HBM exactly once (best on single-TC
      v5e/v6e); 2 on v7x so both TensorCores get work.
    ffn_chunks: stream wm1/wm2 in this many column chunks (extra inner grid
      axis) to bound double-buffered weight VMEM on v7x at large n_state.
    """
    b, n_mels, t = x.shape
    n_audio_ctx = int(t // 2)                         # == int(x.shape[2] // 2)
    t2 = n_audio_ctx
    p = params
    pos = p["pos_embed"][-n_audio_ctx:, :]            # positional_embedding[-n:, :]
    n_state = pos.shape[1]
    n_layer = p["wq"].shape[0]
    n_head = N_HEAD
    hd = n_state // n_head
    mm_dt = MM_DTYPE
    f32 = jnp.float32

    assert b % row_splits == 0
    ffn = 4 * n_state
    assert ffn % ffn_chunks == 0
    fc = ffn // ffn_chunks
    rb = b // row_splits
    rows = rb * t2
    q_tile = _pick_q_tile(t2)
    vmem_limit = _vmem_limit_bytes()

    # ---- parameter prep (constant transforms; cache these in a real pipeline) --
    w1c = p["w1t"].reshape(3 * n_mels, n_state).astype(mm_dt)    # fused conv1 taps
    w2c = p["w2t"].reshape(3 * n_state, n_state).astype(mm_dt)   # fused conv2 taps
    scale = 1.0 / math.sqrt(hd)
    wq_s = (p["wq"] * scale).astype(mm_dt)            # attention scale folded in
    bq_s = p["bq"] * scale
    wk = p["wk"].astype(mm_dt)
    wv = p["wv"].astype(mm_dt)
    wo3 = p["wo"].reshape(n_layer, n_head, hd, n_state).astype(mm_dt)  # head-major
    wm1c = (p["wm1"].reshape(n_layer, n_state, ffn_chunks, fc)
            .transpose(0, 2, 1, 3).astype(mm_dt))                # (L, C, n_state, fc)
    wm2c = p["wm2"].reshape(n_layer, ffn_chunks, fc, n_state).astype(mm_dt)
    bm1c = p["bm1"].reshape(n_layer, 1, ffn_chunks, fc).transpose(0, 2, 1, 3)
    # eight tiny per-layer vectors packed into ONE stacked tensor -> one DMA/step
    vecs = jnp.concatenate([p["aln_w"], p["aln_b"], bq_s, p["bv"], p["bo"],
                            p["mln_w"], p["mln_b"], p["bm2"]], axis=1)  # (L, 8, C)
    lnp_w, lnp_b = p["lnp_w"], p["lnp_b"]

    # ---- stage 1: conv stem + positional embedding (separate pallas_call so the
    # conv weights are never resident during the layer sweep) --------------------
    x_tl = jnp.transpose(x, (0, 2, 1))                                   # (B, T, M)
    x_de = jnp.transpose(x_tl.reshape(b, t2, 2, n_mels),
                         (0, 2, 1, 3)).reshape(b * 2, t2, n_mels)        # even/odd frames

    h0 = pl.pallas_call(
        stem_kernel,
        out_shape=jax.ShapeDtypeStruct((b * t2, n_state), f32),
        grid_spec=pltpu.PrefetchScalarGridSpec(
            num_scalar_prefetch=0,
            grid=(b,),
            in_specs=[
                pl.BlockSpec((2, t2, n_mels), lambda bi: (bi, 0, 0)),
                pl.BlockSpec((3 * n_mels, n_state), lambda bi: (0, 0)),
                pl.BlockSpec((1, n_state), lambda bi: (0, 0)),
                pl.BlockSpec((3 * n_state, n_state), lambda bi: (0, 0)),
                pl.BlockSpec((1, n_state), lambda bi: (0, 0)),
                pl.BlockSpec((t2, n_state), lambda bi: (0, 0)),
            ],
            out_specs=pl.BlockSpec((t2, n_state), lambda bi: (bi, 0)),
        ),
        compiler_params=pltpu.CompilerParams(
            dimension_semantics=("parallel",),
            vmem_limit_bytes=vmem_limit),
    )(x_de, w1c, p["b1"], w2c, p["b2"], pos)

    # ---- stage 2: transformer layer sweep --------------------------------------
    def lspec(a):      # stacked per-layer block, selected by grid axis 1
        nd = a.ndim
        return pl.BlockSpec((1,) + a.shape[1:],
                            lambda r, l, c, _nd=nd: (l,) + (0,) * (_nd - 1))

    def cspec(a):      # stacked per-(layer, ffn-chunk) block
        return pl.BlockSpec((1, 1) + a.shape[2:], lambda r, l, c: (l, c, 0, 0))

    in_specs = [
        pl.BlockSpec((rows, n_state), lambda r, l, c: (r, 0)),     # conv-stem output
        lspec(vecs),
        lspec(wq_s), lspec(wk), lspec(wv), lspec(wo3),
        cspec(wm1c), cspec(wm2c), cspec(bm1c),
        pl.BlockSpec((1, n_state), lambda r, l, c: (0, 0)),        # final LN weight
        pl.BlockSpec((1, n_state), lambda r, l, c: (0, 0)),        # final LN bias
    ]

    # Advisory cost estimate (weights really stream row_splits times).
    def nb(a):
        return int(a.size) * a.dtype.itemsize
    r_total = b * t2
    flops = n_layer * (4 * 2 * r_total * n_state * n_state        # q/k/v/out proj
                       + 2 * 2 * r_total * t2 * n_state           # scores + p@v
                       + 2 * 2 * r_total * n_state * ffn)         # mlp
    transc = n_layer * (n_head * r_total * t2 + r_total * ffn + 4 * r_total)
    wbytes = sum(nb(a) for a in (vecs, wq_s, wk, wv, wo3, wm1c, wm2c, bm1c,
                                 lnp_w, lnp_b))
    cost = pl.CostEstimate(flops=int(flops), transcendentals=int(transc),
                           bytes_accessed=int(2 * nb(h0) + row_splits * wbytes))

    out = pl.pallas_call(
        functools.partial(layer_kernel, n_head=n_head, q_tile=q_tile, t_ctx=t2),
        # NOTE: emit bf16 here if the decoder accepts it (halves writeback);
        # kept f32 so the residual stream / parity check stay full precision.
        out_shape=jax.ShapeDtypeStruct((b * t2, n_state), f32),
        grid_spec=pltpu.PrefetchScalarGridSpec(
            num_scalar_prefetch=0,
            grid=(row_splits, n_layer, ffn_chunks),
            in_specs=in_specs,
            out_specs=pl.BlockSpec((rows, n_state), lambda r, l, c: (r, 0)),
            scratch_shapes=[
                pltpu.VMEM((3, n_head, rows, hd), mm_dt),   # head-major Q/K/V staging
                pltpu.VMEM((rows, n_state), mm_dt),         # pre-LN MLP input
            ],
        ),
        compiler_params=pltpu.CompilerParams(
            dimension_semantics=("parallel", "arbitrary", "arbitrary"),
            vmem_limit_bytes=vmem_limit),
        cost_estimate=cost,
    )(h0, vecs, wq_s, wk, wv, wo3, wm1c, wm2c, bm1c, lnp_w, lnp_b)

    return out.reshape(b, t2, n_state)


# ----------------------- deterministic parameter setup ------------------------
def sinusoids(length, channels, max_timescale=10000.0):
    half = channels // 2
    log_inc = math.log(max_timescale) / (half - 1)
    inv = jnp.exp(-log_inc * jnp.arange(half, dtype=jnp.float32))
    scaled = jnp.arange(length, dtype=jnp.float32)[:, None] * inv[None, :]
    return jnp.concatenate([jnp.sin(scaled), jnp.cos(scaled)], axis=1).astype(jnp.float32)


def init_params(key):
    ks = iter(jax.random.split(key, 32))

    def nrm(shape, s=0.05):
        return s * jax.random.normal(next(ks), shape, jnp.float32)

    conv1_w = nrm((N_STATE, N_MELS, 3), 0.1)     # PyTorch (out, in, k) layout
    conv2_w = nrm((N_STATE, N_STATE, 3), 0.1)

    def stack(shape, s=0.05):
        return nrm((N_LAYER,) + shape, s)

    return {
        "w1t": jnp.transpose(conv1_w, (2, 1, 0)),          # (3, n_mels, n_state)
        "b1": nrm((1, N_STATE)),
        "w2t": jnp.transpose(conv2_w, (2, 1, 0)),          # (3, n_state, n_state)
        "b2": nrm((1, N_STATE)),
        "pos_embed": sinusoids(N_CTX_MAX, N_STATE),        # registered buffer
        "aln_w": jnp.ones((N_LAYER, 1, N_STATE), jnp.float32),
        "aln_b": jnp.zeros((N_LAYER, 1, N_STATE), jnp.float32),
        "wq": stack((N_STATE, N_STATE)), "bq": stack((1, N_STATE)),
        "wk": stack((N_STATE, N_STATE)),                   # no bias in Whisper key proj
        "wv": stack((N_STATE, N_STATE)), "bv": stack((1, N_STATE)),
        "wo": stack((N_STATE, N_STATE)), "bo": stack((1, N_STATE)),
        "mln_w": jnp.ones((N_LAYER, 1, N_STATE), jnp.float32),
        "mln_b": jnp.zeros((N_LAYER, 1, N_STATE), jnp.float32),
        "wm1": stack((N_STATE, 4 * N_STATE)), "bm1": stack((1, 4 * N_STATE)),
        "wm2": stack((4 * N_STATE, N_STATE)), "bm2": stack((1, N_STATE)),
        "lnp_w": jnp.ones((1, N_STATE), jnp.float32),
        "lnp_b": jnp.zeros((1, N_STATE), jnp.float32),
    }


# --------------------------- pure-JAX reference --------------------------------
def ref_forward(x, p):
    """Reference with the same numerics policy: bf16 at dot boundaries, f32 else."""
    f32, bf16 = jnp.float32, jnp.bfloat16
    b, n_mels, t = x.shape
    t2 = t // 2
    pos = p["pos_embed"][-t2:, :]
    n_state = pos.shape[1]
    hd = n_state // N_HEAD
    scale = 1.0 / math.sqrt(hd)

    def mm(a, w):
        return jnp.einsum('...ij,jk->...ik', a.astype(bf16), w.astype(bf16),
                          preferred_element_type=f32)

    x_tl = jnp.transpose(x, (0, 2, 1))
    xp = jnp.pad(x_tl, ((0, 0), (1, 1), (0, 0)))
    y1 = (mm(xp[:, 0:t], p["w1t"][0]) + mm(xp[:, 1:t + 1], p["w1t"][1])
          + mm(xp[:, 2:t + 2], p["w1t"][2]) + p["b1"])
    y1 = _gelu(y1)
    y1p = jnp.pad(y1, ((0, 0), (1, 1), (0, 0)))
    y2 = sum(mm(y1p[:, k:k + 2 * t2:2, :], p["w2t"][k]) for k in range(3)) + p["b2"]
    y2 = _gelu(y2)
    h = y2 + pos[None]

    for l in range(N_LAYER):
        xa = _layernorm(h, p["aln_w"][l], p["aln_b"][l])
        q = mm(xa, p["wq"][l] * scale) + p["bq"][l] * scale
        k = mm(xa, p["wk"][l])
        v = mm(xa, p["wv"][l]) + p["bv"][l]
        qh = q.reshape(b, t2, N_HEAD, hd)
        kh = k.reshape(b, t2, N_HEAD, hd)
        vh = v.reshape(b, t2, N_HEAD, hd)
        sc = jnp.einsum("bqhd,bkhd->bhqk", qh.astype(bf16), kh.astype(bf16),
                        preferred_element_type=f32)
        pw = jax.nn.softmax(sc, axis=-1)
        oh = jnp.einsum("bhqk,bkhd->bqhd", pw.astype(bf16), vh.astype(bf16),
                        preferred_element_type=f32).reshape(b, t2, n_state)
        h = h + mm(oh, p["wo"][l]) + p["bo"][l]
        xm = _layernorm(h, p["mln_w"][l], p["mln_b"][l])
        h = h + mm(_gelu(mm(xm, p["wm1"][l]) + p["bm1"][l]), p["wm2"][l]) + p["bm2"][l]
    return _layernorm(h, p["lnp_w"], p["lnp_b"])


# ----------------------------------- main --------------------------------------
if __name__ == "__main__":
    key = jax.random.PRNGKey(0)
    k_x, k_p = jax.random.split(key)
    params = init_params(k_p)
    x = jax.random.normal(k_x, (B, N_MELS, T), jnp.float32)   # PyTorch NCL mel input

    ref = ref_forward(x, params)

    # Default config: batch folded into rows, weights stream once per layer
    # (the right choice on single-TC v5e/v6e).
    out = jax.block_until_ready(audio_encoder_trt_forward(x, params))
    assert out.shape == (B, T // 2, N_STATE), out.shape
    assert bool(jnp.all(jnp.isfinite(out)))
    assert bool(jnp.allclose(out, ref, atol=2e-2, rtol=2e-2)), (
        float(jnp.max(jnp.abs(out - ref))))

    # v7x-style config: 2 parallel row blocks (one per TensorCore) and the MLP
    # weights streamed in 2 column chunks.
    out2 = jax.block_until_ready(
        audio_encoder_trt_forward(x, params, row_splits=2, ffn_chunks=2))
    assert bool(jnp.allclose(out2, ref, atol=2e-2, rtol=2e-2)), (
        float(jnp.max(jnp.abs(out2 - ref))))

    print("KERNEL_OK")
</pallas_src>

<mosaic_0001>
module attributes {stable_mosaic.version = 11 : i64} {
  func.func @stem_kernel(%arg0: i32, %arg1: memref<2x8x8xf32, #tpu.memory_space<vmem>>, %arg2: memref<24x32xbf16, #tpu.memory_space<vmem>>, %arg3: memref<1x32xf32, #tpu.memory_space<vmem>>, %arg4: memref<96x32xbf16, #tpu.memory_space<vmem>>, %arg5: memref<1x32xf32, #tpu.memory_space<vmem>>, %arg6: memref<8x32xf32, #tpu.memory_space<vmem>>, %arg7: memref<8x32xf32, #tpu.memory_space<vmem>>) attributes {dimension_semantics = [#tpu.dimension_semantics<parallel>], iteration_bounds = array<i64: 2>, scalar_prefetch = 0 : i64, scratch_operands = 0 : i64, tpu.core_type = #tpu.core_type<tc>, window_params = [{transform_indices = @transform_0, window_bounds = array<i64: 2, 8, 8>}, {pipeline_mode = #tpu.pipeline_mode<synchronous>, transform_indices = @transform_1, window_bounds = array<i64: 24, 32>}, {pipeline_mode = #tpu.pipeline_mode<synchronous>, transform_indices = @transform_2, window_bounds = array<i64: 1, 32>}, {pipeline_mode = #tpu.pipeline_mode<synchronous>, transform_indices = @transform_3, window_bounds = array<i64: 96, 32>}, {pipeline_mode = #tpu.pipeline_mode<synchronous>, transform_indices = @transform_4, window_bounds = array<i64: 1, 32>}, {pipeline_mode = #tpu.pipeline_mode<synchronous>, transform_indices = @transform_5, window_bounds = array<i64: 8, 32>}, {transform_indices = @transform_6, window_bounds = array<i64: 8, 32>}]} {
    %c0 = arith.constant 0 : index
    %c0_0 = arith.constant 0 : index
    %c0_1 = arith.constant 0 : index
    %0 = vector.load %arg1[%c0, %c0_0, %c0_1] : memref<2x8x8xf32, #tpu.memory_space<vmem>>, vector<1x8x8xf32>
    %1 = vector.shape_cast %0 : vector<1x8x8xf32> to vector<8x8xf32>
    %c1 = arith.constant 1 : index
    %c0_2 = arith.constant 0 : index
    %c0_3 = arith.constant 0 : index
    %2 = vector.load %arg1[%c1, %c0_2, %c0_3] : memref<2x8x8xf32, #tpu.memory_space<vmem>>, vector<1x8x8xf32>
    %3 = vector.shape_cast %2 : vector<1x8x8xf32> to vector<8x8xf32>
    %c0_4 = arith.constant 0 : index
    %c0_5 = arith.constant 0 : index
    %4 = vector.load %arg2[%c0_4, %c0_5] : memref<24x32xbf16, #tpu.memory_space<vmem>>, vector<24x32xbf16>
    %c0_6 = arith.constant 0 : index
    %c0_7 = arith.constant 0 : index
    %5 = vector.load %arg3[%c0_6, %c0_7] : memref<1x32xf32, #tpu.memory_space<vmem>>, vector<1x32xf32>
    %6 = tpu.iota {dimensions = array<i32: 0>} : vector<8x8xi32>
    %c0_i32 = arith.constant 0 : i32
    %7 = vector.broadcast %c0_i32 : i32 to vector<8x8xi32>
    %8 = arith.cmpi eq, %6, %7 : vector<8x8xi32>
    %c1_i32 = arith.constant 1 : i32
    %9 = tpu.dynamic_rotate %3 by %c1_i32 dim 0 : vector<8x8xf32>, i32 -> vector<8x8xf32>
    %cst = arith.constant 0.000000e+00 : f32
    %10 = vector.broadcast %cst : f32 to vector<8x8xf32>
    %11 = arith.select %8, %10, %9 : vector<8x8xi1>, vector<8x8xf32>
    %12 = tpu.concatenate %11, %1, %3 in 1 : vector<8x8xf32>, vector<8x8xf32>, vector<8x8xf32> -> vector<8x24xf32>
    %13 = tpu.iota {dimensions = array<i32: 0>} : vector<8x8xi32>
    %c7_i32 = arith.constant 7 : i32
    %14 = vector.broadcast %c7_i32 : i32 to vector<8x8xi32>
    %15 = arith.cmpi eq, %13, %14 : vector<8x8xi32>
    %c7_i32_8 = arith.constant 7 : i32
    %16 = tpu.dynamic_rotate %1 by %c7_i32_8 dim 0 : vector<8x8xf32>, i32 -> vector<8x8xf32>
    %cst_9 = arith.constant 0.000000e+00 : f32
    %17 = vector.broadcast %cst_9 : f32 to vector<8x8xf32>
    %18 = arith.select %15, %17, %16 : vector<8x8xi1>, vector<8x8xf32>
    %19 = tpu.concatenate %1, %3, %18 in 1 : vector<8x8xf32>, vector<8x8xf32>, vector<8x8xf32> -> vector<8x24xf32>
    %20 = arith.truncf %12 : vector<8x24xf32> to vector<8x24xbf16>
    %cst_10 = arith.constant dense<0.000000e+00> : vector<8x32xf32>
    %21 = tpu.matmul %20, %4, %cst_10 {dimension_numbers = #tpu.dot_dimension_numbers<[1], [0], [0], [1], [0, 0, 1, 1], [], []>} : vector<8x24xbf16>, vector<24x32xbf16>, vector<8x32xf32> -> vector<8x32xf32>
    %22 = vector.broadcast %5 : vector<1x32xf32> to vector<8x32xf32>
    %23 = arith.addf %21, %22 : vector<8x32xf32>
    %cst_11 = arith.constant 5.000000e-01 : f32
    %24 = vector.broadcast %cst_11 : f32 to vector<8x32xf32>
    %25 = arith.mulf %24, %23 : vector<8x32xf32>
    %cst_12 = arith.constant 4.471500e-02 : f32
    %26 = vector.broadcast %cst_12 : f32 to vector<8x32xf32>
    %27 = arith.mulf %26, %23 : vector<8x32xf32>
    %28 = arith.mulf %27, %23 : vector<8x32xf32>
    %29 = arith.mulf %28, %23 : vector<8x32xf32>
    %30 = arith.addf %23, %29 : vector<8x32xf32>
    %cst_13 = arith.constant 0.797884583 : f32
    %31 = vector.broadcast %cst_13 : f32 to vector<8x32xf32>
    %32 = arith.mulf %31, %30 : vector<8x32xf32>
    %33 = math.tanh %32 : vector<8x32xf32>
    %cst_14 = arith.constant 1.000000e+00 : f32
    %34 = vector.broadcast %cst_14 : f32 to vector<8x32xf32>
    %35 = arith.addf %34, %33 : vector<8x32xf32>
    %36 = arith.mulf %25, %35 : vector<8x32xf32>
    %37 = arith.truncf %19 : vector<8x24xf32> to vector<8x24xbf16>
    %cst_15 = arith.constant dense<0.000000e+00> : vector<8x32xf32>
    %38 = tpu.matmul %37, %4, %cst_15 {dimension_numbers = #tpu.dot_dimension_numbers<[1], [0], [0], [1], [0, 0, 1, 1], [], []>} : vector<8x24xbf16>, vector<24x32xbf16>, vector<8x32xf32> -> vector<8x32xf32>
    %39 = vector.broadcast %5 : vector<1x32xf32> to vector<8x32xf32>
    %40 = arith.addf %38, %39 : vector<8x32xf32>
    %cst_16 = arith.constant 5.000000e-01 : f32
    %41 = vector.broadcast %cst_16 : f32 to vector<8x32xf32>
    %42 = arith.mulf %41, %40 : vector<8x32xf32>
    %cst_17 = arith.constant 4.471500e-02 : f32
    %43 = vector.broadcast %cst_17 : f32 to vector<8x32xf32>
    %44 = arith.mulf %43, %40 : vector<8x32xf32>
    %45 = arith.mulf %44, %40 : vector<8x32xf32>
    %46 = arith.mulf %45, %40 : vector<8x32xf32>
    %47 = arith.addf %40, %46 : vector<8x32xf32>
    %cst_18 = arith.constant 0.797884583 : f32
    %48 = vector.broadcast %cst_18 : f32 to vector<8x32xf32>
    %49 = arith.mulf %48, %47 : vector<8x32xf32>
    %50 = math.tanh %49 : vector<8x32xf32>
    %cst_19 = arith.constant 1.000000e+00 : f32
    %51 = vector.broadcast %cst_19 : f32 to vector<8x32xf32>
    %52 = arith.addf %51, %50 : vector<8x32xf32>
    %53 = arith.mulf %42, %52 : vector<8x32xf32>
    %54 = tpu.iota {dimensions = array<i32: 0>} : vector<8x32xi32>
    %c0_i32_20 = arith.constant 0 : i32
    %55 = vector.broadcast %c0_i32_20 : i32 to vector<8x32xi32>
    %56 = arith.cmpi eq, %54, %55 : vector<8x32xi32>
    %c1_i32_21 = arith.constant 1 : i32
    %57 = tpu.dynamic_rotate %53 by %c1_i32_21 dim 0 : vector<8x32xf32>, i32 -> vector<8x32xf32>
    %cst_22 = arith.constant 0.000000e+00 : f32
    %58 = vector.broadcast %cst_22 : f32 to vector<8x32xf32>
    %59 = arith.select %56, %58, %57 : vector<8x32xi1>, vector<8x32xf32>
    %60 = tpu.concatenate %59, %36, %53 in 1 : vector<8x32xf32>, vector<8x32xf32>, vector<8x32xf32> -> vector<8x96xf32>
    %61 = arith.truncf %60 : vector<8x96xf32> to vector<8x96xbf16>
    %c0_23 = arith.constant 0 : index
    %c0_24 = arith.constant 0 : index
    %62 = vector.load %arg4[%c0_23, %c0_24] : memref<96x32xbf16, #tpu.memory_space<vmem>>, vector<96x32xbf16>
    %cst_25 = arith.constant dense<0.000000e+00> : vector<8x32xf32>
    %63 = tpu.matmul %61, %62, %cst_25 {dimension_numbers = #tpu.dot_dimension_numbers<[1], [0], [0], [1], [0, 0, 1, 1], [], []>} : vector<8x96xbf16>, vector<96x32xbf16>, vector<8x32xf32> -> vector<8x32xf32>
    %c0_26 = arith.constant 0 : index
    %c0_27 = arith.constant 0 : index
    %64 = vector.load %arg5[%c0_26, %c0_27] : memref<1x32xf32, #tpu.memory_space<vmem>>, vector<1x32xf32>
    %65 = vector.broadcast %64 : vector<1x32xf32> to vector<8x32xf32>
    %66 = arith.addf %63, %65 : vector<8x32xf32>
    %cst_28 = arith.constant 5.000000e-01 : f32
    %67 = vector.broadcast %cst_28 : f32 to vector<8x32xf32>
    %68 = arith.mulf %67, %66 : vector<8x32xf32>
    %cst_29 = arith.constant 4.471500e-02 : f32
    %69 = vector.broadcast %cst_29 : f32 to vector<8x32xf32>
    %70 = arith.mulf %69, %66 : vector<8x32xf32>
    %71 = arith.mulf %70, %66 : vector<8x32xf32>
    %72 = arith.mulf %71, %66 : vector<8x32xf32>
    %73 = arith.addf %66, %72 : vector<8x32xf32>
    %cst_30 = arith.constant 0.797884583 : f32
    %74 = vector.broadcast %cst_30 : f32 to vector<8x32xf32>
    %75 = arith.mulf %74, %73 : vector<8x32xf32>
    %76 = math.tanh %75 : vector<8x32xf32>
    %cst_31 = arith.constant 1.000000e+00 : f32
    %77 = vector.broadcast %cst_31 : f32 to vector<8x32xf32>
    %78 = arith.addf %77, %76 : vector<8x32xf32>
    %79 = arith.mulf %68, %78 : vector<8x32xf32>
    %c0_32 = arith.constant 0 : index
    %c0_33 = arith.constant 0 : index
    %80 = vector.load %arg6[%c0_32, %c0_33] : memref<8x32xf32, #tpu.memory_space<vmem>>, vector<8x32xf32>
    %81 = arith.addf %79, %80 : vector<8x32xf32>
    %c0_34 = arith.constant 0 : index
    %c0_35 = arith.constant 0 : index
    %82 = vector.load %arg7[%c0_34, %c0_35] : memref<8x32xf32, #tpu.memory_space<vmem>>, vector<8x32xf32>
    tpu.vector_store %arg7[%c0_34, %c0_35], %81 {strides = array<i32>} : memref<8x32xf32, #tpu.memory_space<vmem>>, vector<8x32xf32>,
    return
  }
  func.func @transform_0(%arg0: i32) -> (i32, i32, i32) {
    %c0_i32 = arith.constant 0 : i32
    %c0_i32_0 = arith.constant 0 : i32
    %c0_i32_1 = arith.constant 0 : i32
    return %arg0, %c0_i32, %c0_i32_0 : i32, i32, i32
  }
  func.func @transform_1(%arg0: i32) -> (i32, i32) {
    %c0_i32 = arith.constant 0 : i32
    %c0_i32_0 = arith.constant 0 : i32
    %c0_i32_1 = arith.constant 0 : i32
    return %c0_i32, %c0_i32_0 : i32, i32
  }
  func.func @transform_2(%arg0: i32) -> (i32, i32) {
    %c0_i32 = arith.constant 0 : i32
    %c0_i32_0 = arith.constant 0 : i32
    %c0_i32_1 = arith.constant 0 : i32
    return %c0_i32, %c0_i32_0 : i32, i32
  }
  func.func @transform_3(%arg0: i32) -> (i32, i32) {
    %c0_i32 = arith.constant 0 : i32
    %c0_i32_0 = arith.constant 0 : i32
    %c0_i32_1 = arith.constant 0 : i32
    return %c0_i32, %c0_i32_0 : i32, i32
  }
  func.func @transform_4(%arg0: i32) -> (i32, i32) {
    %c0_i32 = arith.constant 0 : i32
    %c0_i32_0 = arith.constant 0 : i32
    %c0_i32_1 = arith.constant 0 : i32
    return %c0_i32, %c0_i32_0 : i32, i32
  }
  func.func @transform_5(%arg0: i32) -> (i32, i32) {
    %c0_i32 = arith.constant 0 : i32
    %c0_i32_0 = arith.constant 0 : i32
    %c0_i32_1 = arith.constant 0 : i32
    return %c0_i32, %c0_i32_0 : i32, i32
  }
  func.func @transform_6(%arg0: i32) -> (i32, i32) {
    %c0_i32 = arith.constant 0 : i32
    %c0_i32_0 = arith.constant 0 : i32
    return %arg0, %c0_i32 : i32, i32
  }
}

</mosaic_0001>

<llo_original>
// kernel: tpu_custom_call.1
$region0: #{tpu_custom_call.1}
  #allocation0 [shape = 'u32[]', space=smem, size = 0x4, offset = 0x4, fixed_abs, tag = 'smem constant byte address 0x4 - core index']
  #allocation1 [shape = 'u32[144,128]{1,0:T(1,128)}', space=vmem, size = 0x12000, scoped, tag = 'internal scratch']
  %s0 = inlined_call_operand.vmem [shape: f32[4,8,8], index: 0, kind: input, shape index: {}]
  %s1 = inlined_call_operand.vmem [shape: bf16[24,32], index: 1, kind: input, shape index: {}]
  %s2 = inlined_call_operand.vmem [shape: f32[1,32], index: 2, kind: input, shape index: {}]
  %s3 = inlined_call_operand.vmem [shape: bf16[96,32], index: 3, kind: input, shape index: {}]
  %s4 = inlined_call_operand.vmem [shape: f32[1,32], index: 4, kind: input, shape index: {}]
  %s5 = inlined_call_operand.vmem [shape: f32[8,32], index: 5, kind: input, shape index: {}]
  %s6 = inlined_call_operand.hbm [shape: f32[16,32], index: 6, kind: output, shape index: {}]
  %s7 = sld [smem:[#allocation0]]
  $region57: #{tpu_custom_call.1} parent=0
    _
  %s9 = ssub.s32 1, %s7
  %s10 = scalar_select 0, %s9, %s7
  $region1: #{tpu_custom_call.1} parent=0
    #allocation2 [shape = 'u8[8192]{0}', space=vmem, size = 0x2000, scoped, tag = 'output window, operand 0']
    #allocation3 [shape = 's32[2]{0}', space=sflag, size = 0x8, scoped, tag = 'scoped memory for tpu_custom_call.1']
    %11 = vsyncpa [#allocation3], 0
    %s12 = scalar_lea.sflag [#allocation3], 1
    %13 = vsyncpa %s12, 0
    loop: start=0, step=1, limit=4
    $region2: #{tpu_custom_call.1} parent=1 // loop_pre_header
      _
    $region3: #{tpu_custom_call.1} parent=1 // loop_header
      %s15 = sphi 0, %s19
      %p16 = scmp.ge.s32.totalorder %s15, 4
      %s25 = sphi 0, %s27
      %s28 = sphi 0, %s25
      %s29 = sphi 0, %s28
      %s45 = sphi 0, %s29
      %s49 = sphi 0, %s49
      %s51 = sphi 0, %s49
      %s52 = sphi 0, %s51
      %s66 = sphi 0, %s52
      %s70 = sphi 0, %s70
      %s72 = sphi 0, %s70
      %s73 = sphi 0, %s72
      %s87 = sphi 0, %s73
      %s91 = sphi 0, %s91
      %s93 = sphi 0, %s91
      %s94 = sphi 0, %s93
      %s108 = sphi 0, %s94
      %s112 = sphi 0, %s112
      %s114 = sphi 0, %s112
      %s115 = sphi 0, %s114
      %s129 = sphi 0, %s115
      %s133 = sphi 0, %s133
      %s135 = sphi 0, %s133
      %s136 = sphi 0, %s135
      %s150 = sphi 0, %s136
      %s156 = sphi 0, %s158
      %s159 = sphi 0, %s156
      %s160 = sphi 0, %s159
      %s176 = sphi 0, %s160
    $region4: #{tpu_custom_call.1} parent=1 // loop_header_branch
      %18 = sbr.rel (%p16) target = $region8
    $region5: #{tpu_custom_call.1} parent=1 // loop_body
      %s20 = ssub.s32 %s15, 1
      %s21 = ssub.s32 %s15, 2
      %s22 = sadd.s32 %s15, 1
      %s23 = ssub.s32 %s15, %s22
      %p24 = scmp.eq.s32.totalorder %s23, 0
      %s26 = sadd.s32 %s25, 1
      %s27 = scalar_select %p24, %s25, %s26
      %p30 = pneg %p24
      %p31 = scmp.eq.s32.totalorder %s15, 1
      %p32 = por %p30, %p31
      %p33 = scmp.ne.s32.totalorder %s25, %s28
      %p34 = scmp.eq.s32.totalorder %s15, 0
      %p35 = por %p33, %p34
      %p36 = scmp.ne.s32.totalorder %s25, %s28
      %p37 = scmp.eq.s32.totalorder %s20, 1
      %p38 = por %p36, %p37
      %p39 = scmp.ne.s32.totalorder %s28, %s29
      %p40 = scmp.eq.s32.totalorder %s20, 0
      %p41 = por %p39, %p40
      %p42 = scmp.ne.s32.totalorder %s28, %s29
      %p43 = scmp.eq.s32.totalorder %s21, 1
      %p44 = por %p42, %p43
      %p46 = scmp.ne.s32.totalorder %s29, %s45
      %p47 = scmp.eq.s32.totalorder %s21, 0
      %p48 = por %p46, %p47
      %s50 = sadd.s32 %s49, 1
      %p53 = scmp.eq.s32.totalorder %s15, 1
      %p54 = scmp.ne.s32.totalorder %s49, %s51
      %p55 = scmp.eq.s32.totalorder %s15, 0
      %p56 = por %p54, %p55
      %p57 = scmp.ne.s32.totalorder %s49, %s51
      %p58 = scmp.eq.s32.totalorder %s20, 1
      %p59 = por %p57, %p58
      %p60 = scmp.ne.s32.totalorder %s51, %s52
      %p61 = scmp.eq.s32.totalorder %s20, 0
      %p62 = por %p60, %p61
      %p63 = scmp.ne.s32.totalorder %s51, %s52
      %p64 = scmp.eq.s32.totalorder %s21, 1
      %p65 = por %p63, %p64
      %p67 = scmp.ne.s32.totalorder %s52, %s66
      %p68 = scmp.eq.s32.totalorder %s21, 0
      %p69 = por %p67, %p68
      %s71 = sadd.s32 %s70, 1
      %p74 = scmp.eq.s32.totalorder %s15, 1
      %p75 = scmp.ne.s32.totalorder %s70, %s72
      %p76 = scmp.eq.s32.totalorder %s15, 0
      %p77 = por %p75, %p76
      %p78 = scmp.ne.s32.totalorder %s70, %s72
      %p79 = scmp.eq.s32.totalorder %s20, 1
      %p80 = por %p78, %p79
      %p81 = scmp.ne.s32.totalorder %s72, %s73
      %p82 = scmp.eq.s32.totalorder %s20, 0
      %p83 = por %p81, %p82
      %p84 = scmp.ne.s32.totalorder %s72, %s73
      %p85 = scmp.eq.s32.totalorder %s21, 1
      %p86 = por %p84, %p85
      %p88 = scmp.ne.s32.totalorder %s73, %s87
      %p89 = scmp.eq.s32.totalorder %s21, 0
      %p90 = por %p88, %p89
      %s92 = sadd.s32 %s91, 1
      %p95 = scmp.eq.s32.totalorder %s15, 1
      %p96 = scmp.ne.s32.totalorder %s91, %s93
      %p97 = scmp.eq.s32.totalorder %s15, 0
      %p98 = por %p96, %p97
      %p99 = scmp.ne.s32.totalorder %s91, %s93
      %p100 = scmp.eq.s32.totalorder %s20, 1
      %p101 = por %p99, %p100
      %p102 = scmp.ne.s32.totalorder %s93, %s94
      %p103 = scmp.eq.s32.totalorder %s20, 0
      %p104 = por %p102, %p103
      %p105 = scmp.ne.s32.totalorder %s93, %s94
      %p106 = scmp.eq.s32.totalorder %s21, 1
      %p107 = por %p105, %p106
      %p109 = scmp.ne.s32.totalorder %s94, %s108
      %p110 = scmp.eq.s32.totalorder %s21, 0
      %p111 = por %p109, %p110
      %s113 = sadd.s32 %s112, 1
      %p116 = scmp.eq.s32.totalorder %s15, 1
      %p117 = scmp.ne.s32.totalorder %s112, %s114
      %p118 = scmp.eq.s32.totalorder %s15, 0
      %p119 = por %p117, %p118
      %p120 = scmp.ne.s32.totalorder %s112, %s114
      %p121 = scmp.eq.s32.totalorder %s20, 1
      %p122 = por %p120, %p121
      %p123 = scmp.ne.s32.totalorder %s114, %s115
      %p124 = scmp.eq.s32.totalorder %s20, 0
      %p125 = por %p123, %p124
      %p126 = scmp.ne.s32.totalorder %s114, %s115
      %p127 = scmp.eq.s32.totalorder %s21, 1
      %p128 = por %p126, %p127
      %p130 = scmp.ne.s32.totalorder %s115, %s129
      %p131 = scmp.eq.s32.totalorder %s21, 0
      %p132 = por %p130, %p131
      %s134 = sadd.s32 %s133, 1
      %p137 = scmp.eq.s32.totalorder %s15, 1
      %p138 = scmp.ne.s32.totalorder %s133, %s135
      %p139 = scmp.eq.s32.totalorder %s15, 0
      %p140 = por %p138, %p139
      %p141 = scmp.ne.s32.totalorder %s133, %s135
      %p142 = scmp.eq.s32.totalorder %s20, 1
      %p143 = por %p141, %p142
      %p144 = scmp.ne.s32.totalorder %s135, %s136
      %p145 = scmp.eq.s32.totalorder %s20, 0
      %p146 = por %p144, %p145
      %p147 = scmp.ne.s32.totalorder %s135, %s136
      %p148 = scmp.eq.s32.totalorder %s21, 1
      %p149 = por %p147, %p148
      %p151 = scmp.ne.s32.totalorder %s136, %s150
      %p152 = scmp.eq.s32.totalorder %s21, 0
      %p153 = por %p151, %p152
      %s154 = ssub.s32 %s15, %s22
      %p155 = scmp.eq.s32.totalorder %s154, 0
      %s157 = sadd.s32 %s156, 1
      %s158 = scalar_select %p155, %s156, %s157
      %p161 = pneg %p155
      %p162 = scmp.eq.s32.totalorder %s15, 1
      %p163 = por %p161, %p162
      %p164 = scmp.ne.s32.totalorder %s156, %s159
      %p165 = scmp.eq.s32.totalorder %s15, 0
      %p166 = por %p164, %p165
      %p167 = scmp.ne.s32.totalorder %s156, %s159
      %p168 = scmp.eq.s32.totalorder %s20, 1
      %p169 = por %p167, %p168
      %p170 = scmp.ne.s32.totalorder %s159, %s160
      %p171 = scmp.eq.s32.totalorder %s20, 0
      %p172 = por %p170, %p171
      %p173 = scmp.ne.s32.totalorder %s159, %s160
      %p174 = scmp.eq.s32.totalorder %s21, 1
      %p175 = por %p173, %p174
      %p177 = scmp.ne.s32.totalorder %s160, %s176
      %p178 = scmp.eq.s32.totalorder %s21, 0
      %p179 = por %p177, %p178
      %p180 = scmp.le.s32.totalorder 1, %s15
      %p181 = scmp.lt.s32.totalorder %s15, 3
      %p182 = pnand %p180, %p181
      %p183 = pneg %p182
      // Predicated region
      $region9: #{tpu_custom_call.1} parent=5 // pred_check
        _
      $region10: #{tpu_custom_call.1} parent=5 // pred_check_branch
        %185 = sbr.rel (%p182) target = $region12
      $region11: #{tpu_custom_call.1} parent=5 // pred_region
        %s186 = ssub.s32 %s15, 1
        // Predicated region
        $region13: #{tpu_custom_call.1} parent=11 // pred_check
          %p187 = pneg %p62
        $region14: #{tpu_custom_call.1} parent=11 // pred_check_branch
          %189 = sbr.rel (%p187) target = $region16
        $region15: #{tpu_custom_call.1} parent=11 // pred_region
          _
        $region16: #{tpu_custom_call.1} parent=11 // pred_fallthru
          _
        // Predicated region
        $region17: #{tpu_custom_call.1} parent=11 // pred_check
          %p190 = pneg %p83
        $region18: #{tpu_custom_call.1} parent=11 // pred_check_branch
          %192 = sbr.rel (%p190) target = $region20
        $region19: #{tpu_custom_call.1} parent=11 // pred_region
          _
        $region20: #{tpu_custom_call.1} parent=11 // pred_fallthru
          _
        // Predicated region
        $region21: #{tpu_custom_call.1} parent=11 // pred_check
          %p193 = pneg %p104
        $region22: #{tpu_custom_call.1} parent=11 // pred_check_branch
          %195 = sbr.rel (%p193) target = $region24
        $region23: #{tpu_custom_call.1} parent=11 // pred_region
          _
        $region24: #{tpu_custom_call.1} parent=11 // pred_fallthru
          _
        // Predicated region
        $region25: #{tpu_custom_call.1} parent=11 // pred_check
          %p196 = pneg %p125
        $region26: #{tpu_custom_call.1} parent=11 // pred_check_branch
          %198 = sbr.rel (%p196) target = $region28
        $region27: #{tpu_custom_call.1} parent=11 // pred_region
          _
        $region28: #{tpu_custom_call.1} parent=11 // pred_fallthru
          _
        // Predicated region
        $region29: #{tpu_custom_call.1} parent=11 // pred_check
          %p199 = pneg %p146
        $region30: #{tpu_custom_call.1} parent=11 // pred_check_branch
          %201 = sbr.rel (%p199) target = $region32
        $region31: #{tpu_custom_call.1} parent=11 // pred_region
          _
        $region32: #{tpu_custom_call.1} parent=11 // pred_fallthru
          _
      $region12: #{tpu_custom_call.1} parent=5 // pred_fallthru
        _
      %p202 = scmp.lt.s32.totalorder %s15, 2
      // Predicated region
      $region33: #{tpu_custom_call.1} parent=5 // pred_check
        %p203 = pneg %p202
      $region34: #{tpu_custom_call.1} parent=5 // pred_check_branch
        %205 = sbr.rel (%p203) target = $region36
      $region35: #{tpu_custom_call.1} parent=5 // pred_region
        // Predicated region
        $region37: #{tpu_custom_call.1} parent=35 // pred_check
          %p206 = pneg %p35
        $region38: #{tpu_custom_call.1} parent=35 // pred_check_branch
          %208 = sbr.rel (%p206) target = $region40
        $region39: #{tpu_custom_call.1} parent=35 // pred_region
          %s209 = smul.u32 2, %s15
          %p210 = scmp.lt.s32.totalorder %s209, 3
          %s211 = scalar_select %p210, %s209, 3
          %s212 = smul.addr %s211, 8
          %s213 = scalar_lea.vmem %s0, %s212
          %s214 = smul.u32 2, %s15
        $region40: #{tpu_custom_call.1} parent=35 // pred_fallthru
          _
      $region36: #{tpu_custom_call.1} parent=5 // pred_fallthru
        _
      %p215 = scmp.le.s32.totalorder 1, %s15
      %p216 = scmp.lt.s32.totalorder %s15, 3
      %p217 = pnand %p215, %p216
      %p218 = pneg %p217
      // Predicated region
      $region41: #{tpu_custom_call.1} parent=5 // pred_check
        _
      $region42: #{tpu_custom_call.1} parent=5 // pred_check_branch
        %220 = sbr.rel (%p217) target = $region44
      $region43: #{tpu_custom_call.1} parent=5 // pred_region
        %s221 = ssub.s32 %s15, 1
        %s222 = smul.u32 2, %s20
        %p223 = scmp.lt.s32.totalorder %s222, 3
        %s224 = scalar_select %p223, %s222, 3
        %s225 = smul.addr %s224, 8
        %s226 = scalar_lea.vmem %s0, %s225
        %p227 = pneg %p41
        %p228 = pneg %p38
        %p229 = pneg %p62
        %p230 = pneg %p59
        %p231 = pneg %p83
        %p232 = pneg %p80
        %p233 = pneg %p104
        %p234 = pneg %p101
        %p235 = pneg %p125
        %p236 = pneg %p122
        %p237 = pneg %p146
        %p238 = pneg %p143
        %p239 = pneg %p172
        %p240 = pneg %p169
        %s241 = sand.u32 %s159, 1
        %s242 = scalar_lea.sflag [#allocation3], %s241
        %s243 = sand.u32 %s159, 1
        %s244 = smul.addr %s243, 8
        %s245 = scalar_lea.vmem [#allocation2], %s244
        %s246 = smul.u32 2, %s20
        %p247 = scmp.lt.s32.totalorder %s246, 3
        %s248 = scalar_select %p247, %s246, 3
        %s249 = smul.addr %s248, 8
        %s250 = scalar_lea.vmem %s0, %s249
        %s251 = smul.u32 2, %s20
        %v253 = vld [vmem:[%s250] sm:$0xff]
        %s254 = scalar_lea.vmem %s250, 8
        %v255 = vld [vmem:[%s254] sm:$0xff]
        %v256 = vld [vmem:[%s1] sm:$0xf]
        %v257 = vld [vmem:[%s1 + $0x4] sm:$0xf]
        %v258 = vld [vmem:[%s1 + $0x8] sm:$0xf]
        %v259 = vld [vmem:[%s2] sm:$0x1]
        %v260 = vlaneseq
        %v261 = vshrl.u32 %v260, 7
        %vm262 = vcmp.eq.s32.totalorder %v261, 0
        %v263 = vrot.slane %v255, 7
        %v264 = vsel %vm262, 0.0, %v263
        %266 = vrot.lane.b32.xlu0 %v253, 8
        %v267 = vpop.permute.xlu0 %266
        %270 = vrot.lane.b32.xlu0 %v255, 16
        %v271 = vpop.permute.xlu0 %270
        %vm273 = vcmask 64512
        %v274 = vsel %vm273, %v264, %v267
        %vm275 = vcmask 130048
        %v276 = vsel %vm275, %v274, %v271
        %vm277 = vcmp.eq.s32.totalorder %v261, 7
        %v278 = vrot.slane %v253, 1
        %v279 = vsel %vm277, 0.0, %v278
        %280 = vrot.lane.b32.xlu0 %v255, 8
        %v281 = vpop.permute.xlu0 %280
        %284 = vrot.lane.b32.xlu0 %v279, 16
        %v285 = vpop.permute.xlu0 %284
        %v287 = vsel %vm273, %v253, %v281
        %v288 = vsel %vm275, %v287, %v285
        %v289 = vpack.c.bf16 %v276, %v276
        %v291 = vlaneseq
        %v292 = vshrl.u32 %v291, 7
        %v293 = vsub.s32 0, %v292
        %v294 = vrot.slane %v259, %v293
        %v299 = vunpack.c.l.b16 %v256
        %v300 = vunpack.c.l.b16 %v257
        %v301 = vunpack.c.l.b16 %v258
        %v302 = vpack.c.b16 %v300, %v299
        %v303 = vpack.c.b16 %v301, %v301
        %vm305 = vcmask 195584
        %v307 = vsel %vm305, %v289, 0
        %vm309 = vcmask 1043456
        %v311 = vsel %vm309, %v303, 0
        %313 = vmatprep.subr.bf16.mxu0 0
        %314 = vmatpush1.bf16.msra.mxu0 0
        %315 = vmatprep.subr.bf16.mxu0 0
        %316 = vmatpush1.bf16.msra.mxu0 0
        %317 = vmatprep.subr.bf16.mxu0 0
        %318 = vmatpush1.bf16.msra.mxu0 0
        %319 = vmatprep.subr.bf16.mxu0 0
        %320 = vmatpush1.bf16.msra.mxu0 0
        %321 = vmatprep.subr.bf16.mxu0 0
        %322 = vmatpush1.bf16.msra.mxu0 0
        %323 = vmatprep.subr.bf16.mxu0 0
        %324 = vmatpush1.bf16.msra.mxu0 0
        %325 = vmatprep.subr.bf16.mxu0 0
        %326 = vmatpush1.bf16.msra.mxu0 %v311
        %327 = vmatprep.subr.bf16.mxu0 0
        %328 = vmatpush1.bf16.msra.mxu0 %v302
        %329 = vmatprep.subr.bf16.mxu0 0
        %330 = vmatpush2.bf16.msra.mxu0 0
        %331 = vmatprep.subr.bf16.mxu0 0
        %332 = vmatpush2.bf16.msra.mxu0 0
        %333 = vmatprep.subr.bf16.mxu0 0
        %334 = vmatpush2.bf16.msra.mxu0 0
        %335 = vmatprep.subr.bf16.mxu0 0
        %336 = vmatpush2.bf16.msra.mxu0 0
        %337 = vmatprep.subr.bf16.mxu0 0
        %338 = vmatpush2.bf16.msra.mxu0 0
        %339 = vmatprep.subr.bf16.mxu0 0
        %340 = vmatpush2.bf16.msra.mxu0 0
        %341 = vmatprep.subr.bf16.mxu0 0
        %342 = vmatpush2.bf16.msra.mxu0 0
        %343 = vmatprep.subr.bf16.mxu0 0
        %344 = vmatpush2.bf16.msra.mxu0 0
        %345 = vmatprep.mubr.bf16.mxu0 0
        %346 = vmatmul.mubr.bf16.gmra.mxu0 %v307
        %v347 = vpop.f32.mrf.mxu0
        %v348 = vadd.f32 %v294, %v347
        %v349 = vpop.f32.mrf.mxu0
        %v350 = vpop.f32.mrf.mxu0
        %v351 = vpop.f32.mrf.mxu0
        %352 = vdwg.mxu0
        %v353 = vmul.f32 %v348, 0.5
        %v354 = vmul.f32 %v348, 0.044715
        %v355 = vmul.f32 %v354, %v348
        %v356 = vmul.f32 %v355, %v348
        %v357 = vadd.f32 %v348, %v356
        %v358 = vmul.f32 %v357, 0.7978846
        %v359 = vtanh.pop %v358
        %v360 = vadd.f32 %v359, 1.0
        %v361 = vmul.f32 %v353, %v360
        %v362 = vpack.c.bf16 %v288, %v288
        %v364 = vsel %vm305, %v362, 0
        %366 = vmatprep.subr.bf16.mxu0 0
        %367 = vmatpush1.bf16.msra.mxu0 0
        %368 = vmatprep.subr.bf16.mxu0 0
        %369 = vmatpush1.bf16.msra.mxu0 0
        %370 = vmatprep.subr.bf16.mxu0 0
        %371 = vmatpush1.bf16.msra.mxu0 0
        %372 = vmatprep.subr.bf16.mxu0 0
        %373 = vmatpush1.bf16.msra.mxu0 0
        %374 = vmatprep.subr.bf16.mxu0 0
        %375 = vmatpush1.bf16.msra.mxu0 0
        %376 = vmatprep.subr.bf16.mxu0 0
        %377 = vmatpush1.bf16.msra.mxu0 0
        %378 = vmatprep.subr.bf16.mxu0 0
        %379 = vmatpush1.bf16.msra.mxu0 %v311
        %380 = vmatprep.subr.bf16.mxu0 0
        %381 = vmatpush1.bf16.msra.mxu0 %v302
        %382 = vmatprep.subr.bf16.mxu0 0
        %383 = vmatpush2.bf16.msra.mxu0 0
        %384 = vmatprep.subr.bf16.mxu0 0
        %385 = vmatpush2.bf16.msra.mxu0 0
        %386 = vmatprep.subr.bf16.mxu0 0
        %387 = vmatpush2.bf16.msra.mxu0 0
        %388 = vmatprep.subr.bf16.mxu0 0
        %389 = vmatpush2.bf16.msra.mxu0 0
        %390 = vmatprep.subr.bf16.mxu0 0
        %391 = vmatpush2.bf16.msra.mxu0 0
        %392 = vmatprep.subr.bf16.mxu0 0
        %393 = vmatpush2.bf16.msra.mxu0 0
        %394 = vmatprep.subr.bf16.mxu0 0
        %395 = vmatpush2.bf16.msra.mxu0 0
        %396 = vmatprep.subr.bf16.mxu0 0
        %397 = vmatpush2.bf16.msra.mxu0 0
        %398 = vmatprep.mubr.bf16.mxu0 0
        %399 = vmatmul.mubr.bf16.gmra.mxu0 %v364
        %v400 = vpop.f32.mrf.mxu0
        %v401 = vadd.f32 %v294, %v400
        %v402 = vpop.f32.mrf.mxu0
        %v403 = vpop.f32.mrf.mxu0
        %v404 = vpop.f32.mrf.mxu0
        %405 = vdwg.mxu0
        %v406 = vmul.f32 %v401, 0.5
        %v407 = vmul.f32 %v401, 0.044715
        %v408 = vmul.f32 %v407, %v401
        %v409 = vmul.f32 %v408, %v401
        %v410 = vadd.f32 %v401, %v409
        %v411 = vmul.f32 %v410, 0.7978846
        %v412 = vtanh.pop %v411
        %v413 = vadd.f32 %v412, 1.0
        %v414 = vmul.f32 %v406, %v413
        %v415 = vrot.slane %v414, 7
        %v416 = vsel %vm262, 0.0, %v415
        %418 = vrot.lane.b32.xlu0 %v361, 32
        %v419 = vpop.permute.xlu0 %418
        %422 = vrot.lane.b32.xlu0 %v414, 64
        %v423 = vpop.permute.xlu0 %422
        %vm425 = vcmask 261120
        %v426 = vsel %vm425, %v416, %v419
        %vm427 = vcmask 523264
        %v428 = vsel %vm427, %v426, %v423
        %v429 = vpack.c.bf16 %v428, %v428
        %v430 = vld [vmem:[%s3] sm:$0xf]
        %v431 = vld [vmem:[%s3 + $0x4] sm:$0xf]
        %v432 = vld [vmem:[%s3 + $0x8] sm:$0xf]
        %v433 = vld [vmem:[%s3 + $0xc] sm:$0xf]
        %v434 = vld [vmem:[%s3 + $0x10] sm:$0xf]
        %v435 = vld [vmem:[%s3 + $0x14] sm:$0xf]
        %v436 = vld [vmem:[%s3 + $0x18] sm:$0xf]
        %v437 = vld [vmem:[%s3 + $0x1c] sm:$0xf]
        %v438 = vld [vmem:[%s3 + $0x20] sm:$0xf]
        %v439 = vld [vmem:[%s3 + $0x24] sm:$0xf]
        %v440 = vld [vmem:[%s3 + $0x28] sm:$0xf]
        %v441 = vld [vmem:[%s3 + $0x2c] sm:$0xf]
        %v442 = vld [vmem:[%s4] sm:$0x1]
        %v444 = vlaneseq
        %v445 = vshrl.u32 %v444, 7
        %v446 = vsub.s32 0, %v445
        %v447 = vrot.slane %v442, %v446
        %v461 = vunpack.c.l.b16 %v430
        %v462 = vunpack.c.l.b16 %v431
        %v463 = vunpack.c.l.b16 %v432
        %v464 = vunpack.c.l.b16 %v433
        %v465 = vunpack.c.l.b16 %v434
        %v466 = vunpack.c.l.b16 %v435
        %v467 = vunpack.c.l.b16 %v436
        %v468 = vunpack.c.l.b16 %v437
        %v469 = vunpack.c.l.b16 %v438
        %v470 = vunpack.c.l.b16 %v439
        %v471 = vunpack.c.l.b16 %v440
        %v472 = vunpack.c.l.b16 %v441
        %v473 = vpack.c.b16 %v462, %v461
        %v474 = vpack.c.b16 %v464, %v463
        %v475 = vpack.c.b16 %v466, %v465
        %v476 = vpack.c.b16 %v468, %v467
        %v477 = vpack.c.b16 %v470, %v469
        %v478 = vpack.c.b16 %v472, %v471
        %vm485 = vcmask 785408
        %v487 = vsel %vm485, %v429, 0
        %489 = vmatprep.subr.bf16.mxu0 0
        %490 = vmatpush1.bf16.msra.mxu0 0
        %491 = vmatprep.subr.bf16.mxu0 0
        %492 = vmatpush1.bf16.msra.mxu0 0
        %493 = vmatprep.subr.bf16.mxu0 0
        %494 = vmatpush1.bf16.msra.mxu0 %v478
        %495 = vmatprep.subr.bf16.mxu0 0
        %496 = vmatpush1.bf16.msra.mxu0 %v477
        %497 = vmatprep.subr.bf16.mxu0 0
        %498 = vmatpush1.bf16.msra.mxu0 %v476
        %499 = vmatprep.subr.bf16.mxu0 0
        %500 = vmatpush1.bf16.msra.mxu0 %v475
        %501 = vmatprep.subr.bf16.mxu0 0
        %502 = vmatpush1.bf16.msra.mxu0 %v474
        %503 = vmatprep.subr.bf16.mxu0 0
        %504 = vmatpush1.bf16.msra.mxu0 %v473
        %505 = vmatprep.subr.bf16.mxu0 0
        %506 = vmatpush2.bf16.msra.mxu0 0
        %507 = vmatprep.subr.bf16.mxu0 0
        %508 = vmatpush2.bf16.msra.mxu0 0
        %509 = vmatprep.subr.bf16.mxu0 0
        %510 = vmatpush2.bf16.msra.mxu0 0
        %511 = vmatprep.subr.bf16.mxu0 0
        %512 = vmatpush2.bf16.msra.mxu0 0
        %513 = vmatprep.subr.bf16.mxu0 0
        %514 = vmatpush2.bf16.msra.mxu0 0
        %515 = vmatprep.subr.bf16.mxu0 0
        %516 = vmatpush2.bf16.msra.mxu0 0
        %517 = vmatprep.subr.bf16.mxu0 0
        %518 = vmatpush2.bf16.msra.mxu0 0
        %519 = vmatprep.subr.bf16.mxu0 0
        %520 = vmatpush2.bf16.msra.mxu0 0
        %521 = vmatprep.mubr.bf16.mxu0 0
        %522 = vmatmul.mubr.bf16.gmra.mxu0 %v487
        %v523 = vpop.f32.mrf.mxu0
        %v524 = vadd.f32 %v447, %v523
        %v525 = vpop.f32.mrf.mxu0
        %v526 = vpop.f32.mrf.mxu0
        %v527 = vpop.f32.mrf.mxu0
        %528 = vdwg.mxu0
        %v529 = vmul.f32 %v524, 0.5
        %v530 = vmul.f32 %v524, 0.044715
        %v531 = vmul.f32 %v530, %v524
        %v532 = vmul.f32 %v531, %v524
        %v533 = vadd.f32 %v524, %v532
        %v534 = vmul.f32 %v533, 0.7978846
        %v535 = vtanh.pop %v534
        %v536 = vadd.f32 %v535, 1.0
        %v537 = vmul.f32 %v529, %v536
        %v538 = vld [vmem:[%s5] sm:$0xff]
        %v539 = vadd.f32 %v537, %v538
        %540 = vst.msk [vmem:[%s245] sm:$0xff] %vm425, %v539
        %s541 = sand.u32 %s159, 1
        %s542 = scalar_lea.sflag [#allocation3], %s541
        %s543 = sand.u32 %s159, 1
        %s544 = smul.addr %s543, 8
        %s545 = scalar_lea.vmem [#allocation2], %s544
        // Predicated region
        $region45: #{tpu_custom_call.1} parent=43 // pred_check
          %p546 = pneg %p169
        $region46: #{tpu_custom_call.1} parent=43 // pred_check_branch
          %548 = sbr.rel (%p546) target = $region48
        $region47: #{tpu_custom_call.1} parent=43 // pred_region
          %s550 = ssub.s32 128, 128
          %551 = vsyncadd %s542, %s550
          %s552 = smul.addr %s20, 128
          %s553 = scalar_lea.hbm %s6, %s552
          %s555 = sshll.u32 %s545, 4
          %s556 = int_to_ptr.vmem [resolvable:$true] %s555
          %558 = dma.vmem_to_hbm [thread:$0]  %s556, 128, %s553, %s542
        $region48: #{tpu_custom_call.1} parent=43 // pred_fallthru
          _
      $region44: #{tpu_custom_call.1} parent=5 // pred_fallthru
        _
      %p559 = scmp.le.s32.totalorder 2, %s15
      // Predicated region
      $region49: #{tpu_custom_call.1} parent=5 // pred_check
        %p560 = pneg %p559
      $region50: #{tpu_custom_call.1} parent=5 // pred_check_branch
        %562 = sbr.rel (%p560) target = $region52
      $region51: #{tpu_custom_call.1} parent=5 // pred_region
        %s563 = ssub.s32 %s15, 2
        // Predicated region
        $region53: #{tpu_custom_call.1} parent=51 // pred_check
          %p564 = pneg %p175
        $region54: #{tpu_custom_call.1} parent=51 // pred_check_branch
          %566 = sbr.rel (%p564) target = $region56
        $region55: #{tpu_custom_call.1} parent=51 // pred_region
          %s567 = sand.u32 %s160, 1
          %s568 = scalar_lea.sflag [#allocation3], %s567
          %s569 = sand.u32 %s160, 1
          %s570 = smul.addr %s569, 8
          %s571 = scalar_lea.vmem [#allocation2], %s570
          %572 = dma.done %s568, 128
        $region56: #{tpu_custom_call.1} parent=51 // pred_fallthru
          _
      $region52: #{tpu_custom_call.1} parent=5 // pred_fallthru
        _
    $region6: #{tpu_custom_call.1} parent=1 // loop_footer
      %s19 = sadd.s32 1, %s15
    $region7: #{tpu_custom_call.1} parent=1 // loop_footer_branch
      %14 = sbr.rel target = $region3
    $region8: #{tpu_custom_call.1} parent=1 // loop_exit
      _
    %573 = vsyncpa [#allocation3], 1
    %s574 = scalar_lea.sflag [#allocation3], 1
    %575 = vsyncpa %s574, 1

</llo_original>
